<compile_context>
chip_gen: v5e
topology: v5e:2x2
jax: 0.10.0
libtpu: 0.0.40
codegen_flags: <defaults>
</compile_context>

<pallas_src>
import jax
import jax.numpy as jnp
from jax.experimental import pallas as pl
from jax.experimental.pallas import tpu as pltpu


def _round_up(x, m):
    return ((x + m - 1) // m) * m


def _context_project_kernel(ctx_ref, w_ref, out_ref):
    """One MXU matmul per batch tile.

    ctx_ref : VMEM (TB, 2D)  gathered [cur | first] context rows
    w_ref   : VMEM (2D, D)   projection weight (torch weight transposed)
    out_ref : VMEM (TB, D)
    """
    out_ref[...] = jnp.dot(
        ctx_ref[...], w_ref[...], preferred_element_type=jnp.float32
    ).astype(out_ref.dtype)


def env_context_embedder(embeddings, current_node, first_node, weight, *,
                         tb=None, compute_dtype=None):
    """embeddings: [B, N, D]; current_node/first_node: [B] int; weight: [2D, D]
    (already transposed from torch's [D, 2D]).  Returns [B, D].

    compute_dtype: optional streaming dtype (e.g. jnp.bfloat16).  Accumulation
    stays f32; output dtype stays embeddings.dtype.
    """
    B, N, D = embeddings.shape
    assert weight.shape == (2 * D, D)

    # --- Fused gather in the wrapper: one gather producing [cur | first]. ---
    batch_idx = jnp.arange(B)
    idx = jnp.stack(
        [current_node.astype(jnp.int32), first_node.astype(jnp.int32)], axis=-1
    )                                                   # [B, 2]
    ctx = embeddings[batch_idx[:, None], idx]           # [B, 2, D]
    ctx = ctx.reshape(B, 2 * D)                         # lane-contiguous concat

    w = weight
    if compute_dtype is not None:
        ctx = ctx.astype(compute_dtype)
        w = w.astype(compute_dtype)

    # --- Batch tile: big tiles to amortize per-step overhead; >=2 tiles for
    # --- v7x's two TensorCores once B is large enough to bother splitting. ---
    if tb is None:
        if B <= 128:
            tb = B                                       # full-array block (always legal)
        else:
            tb = min(1024, _round_up(pl.cdiv(B, 2), 8))
    n_tiles = pl.cdiv(B, tb)

    in_itemsize = jnp.dtype(ctx.dtype).itemsize
    out_itemsize = jnp.dtype(embeddings.dtype).itemsize
    cost = pl.CostEstimate(
        flops=2 * B * (2 * D) * D,
        transcendentals=0,
        bytes_accessed=(B * 2 * D + 2 * D * D) * in_itemsize + B * D * out_itemsize,
    )

    out = pl.pallas_call(
        _context_project_kernel,
        out_shape=jax.ShapeDtypeStruct((B, D), embeddings.dtype),
        grid_spec=pltpu.PrefetchScalarGridSpec(
            num_scalar_prefetch=0,
            grid=(n_tiles,),
            in_specs=[
                pl.BlockSpec((tb, 2 * D), lambda i: (i, 0)),     # context rows
                pl.BlockSpec((2 * D, D), lambda i: (0, 0)),      # weight, VMEM-resident
            ],
            out_specs=pl.BlockSpec((tb, D), lambda i: (i, 0)),
        ),
        compiler_params=pltpu.CompilerParams(
            dimension_semantics=("parallel",)),
        cost_estimate=cost,
    )(ctx, w)

    return out


def _reference(embeddings, current_node, first_node, weight):
    B = embeddings.shape[0]
    batch_idx = jnp.arange(B)
    cur = embeddings[batch_idx, current_node]
    first = embeddings[batch_idx, first_node]
    return jnp.concatenate([cur, first], axis=-1) @ weight


if __name__ == "__main__":
    key = jax.random.PRNGKey(0)

    # --- Small shapes consistent with the module: batch=2, nodes=16, D=32 ---
    B, N, D = 2, 16, 32
    k_emb, k_w, k_cur, k_first, k2 = jax.random.split(key, 5)
    embeddings = jax.random.normal(k_emb, (B, N, D), dtype=jnp.float32)
    # Deterministic init of nn.Linear(2D, D, bias=False); stored as [2D, D].
    weight = (jax.random.uniform(k_w, (2 * D, D), dtype=jnp.float32,
                                 minval=-1.0, maxval=1.0)
              * (1.0 / jnp.sqrt(2.0 * D)))
    current_node = jax.random.randint(k_cur, (B,), 0, N, dtype=jnp.int32)
    first_node = jax.random.randint(k_first, (B,), 0, N, dtype=jnp.int32)

    out = env_context_embedder(embeddings, current_node, first_node, weight)
    out = jax.block_until_ready(out)
    ref = _reference(embeddings, current_node, first_node, weight)
    assert out.shape == (B, D)
    assert jnp.allclose(out, ref, atol=1e-5, rtol=1e-5), "small-shape mismatch"

    # --- Larger batch, D=128: two-tile grid with a partial (masked) tail block ---
    B2, N2, D2 = 300, 50, 128
    k_emb2, k_w2, k_cur2, k_first2 = jax.random.split(k2, 4)
    embeddings2 = jax.random.normal(k_emb2, (B2, N2, D2), dtype=jnp.float32)
    weight2 = (jax.random.uniform(k_w2, (2 * D2, D2), dtype=jnp.float32,
                                  minval=-1.0, maxval=1.0)
               * (1.0 / jnp.sqrt(2.0 * D2)))
    current_node2 = jax.random.randint(k_cur2, (B2,), 0, N2, dtype=jnp.int32)
    first_node2 = jax.random.randint(k_first2, (B2,), 0, N2, dtype=jnp.int32)

    out2 = env_context_embedder(embeddings2, current_node2, first_node2, weight2)
    out2 = jax.block_until_ready(out2)
    ref2 = _reference(embeddings2, current_node2, first_node2, weight2)
    assert out2.shape == (B2, D2)
    assert jnp.allclose(out2, ref2, atol=1e-4, rtol=1e-4), "large-shape mismatch"

    # --- bf16 streaming path (f32 accumulation), looser tolerance ---
    out3 = env_context_embedder(embeddings2, current_node2, first_node2, weight2,
                                compute_dtype=jnp.bfloat16)
    out3 = jax.block_until_ready(out3)
    assert out3.shape == (B2, D2)
    assert bool(jnp.all(jnp.isfinite(out3)))
    assert jnp.allclose(out3, ref2, atol=1e-1, rtol=1e-1), "bf16-path mismatch"

    print("KERNEL_OK")
</pallas_src>

<mosaic_0001>
module attributes {stable_mosaic.version = 11 : i64} {
  func.func @_context_project_kernel(%arg0: i32, %arg1: memref<2x64xf32, #tpu.memory_space<vmem>>, %arg2: memref<64x32xf32, #tpu.memory_space<vmem>>, %arg3: memref<2x32xf32, #tpu.memory_space<vmem>>) attributes {dimension_semantics = [#tpu.dimension_semantics<parallel>], iteration_bounds = array<i64: 1>, scalar_prefetch = 0 : i64, scratch_operands = 0 : i64, tpu.core_type = #tpu.core_type<tc>, window_params = [{transform_indices = @transform_0, window_bounds = array<i64: 2, 64>}, {pipeline_mode = #tpu.pipeline_mode<synchronous>, transform_indices = @transform_1, window_bounds = array<i64: 64, 32>}, {transform_indices = @transform_2, window_bounds = array<i64: 2, 32>}]} {
    %c0 = arith.constant 0 : index
    %c0_0 = arith.constant 0 : index
    %0 = vector.load %arg1[%c0, %c0_0] : memref<2x64xf32, #tpu.memory_space<vmem>>, vector<2x64xf32>
    %c0_1 = arith.constant 0 : index
    %c0_2 = arith.constant 0 : index
    %1 = vector.load %arg2[%c0_1, %c0_2] : memref<64x32xf32, #tpu.memory_space<vmem>>, vector<64x32xf32>
    %cst = arith.constant dense<0.000000e+00> : vector<2x32xf32>
    %2 = tpu.matmul %0, %1, %cst {dimension_numbers = #tpu.dot_dimension_numbers<[1], [0], [0], [1], [0, 0, 1, 1], [], []>} : vector<2x64xf32>, vector<64x32xf32>, vector<2x32xf32> -> vector<2x32xf32>
    %c0_3 = arith.constant 0 : index
    %c0_4 = arith.constant 0 : index
    %3 = vector.load %arg3[%c0_3, %c0_4] : memref<2x32xf32, #tpu.memory_space<vmem>>, vector<2x32xf32>
    tpu.vector_store %arg3[%c0_3, %c0_4], %2 {strides = array<i32>} : memref<2x32xf32, #tpu.memory_space<vmem>>, vector<2x32xf32>,
    return
  }
  func.func @transform_0(%arg0: i32) -> (i32, i32) {
    %c0_i32 = arith.constant 0 : i32
    %c0_i32_0 = arith.constant 0 : i32
    return %arg0, %c0_i32 : i32, i32
  }
  func.func @transform_1(%arg0: i32) -> (i32, i32) {
    %c0_i32 = arith.constant 0 : i32
    %c0_i32_0 = arith.constant 0 : i32
    %c0_i32_1 = arith.constant 0 : i32
    return %c0_i32, %c0_i32_0 : i32, i32
  }
  func.func @transform_2(%arg0: i32) -> (i32, i32) {
    %c0_i32 = arith.constant 0 : i32
    %c0_i32_0 = arith.constant 0 : i32
    return %arg0, %c0_i32 : i32, i32
  }
}

</mosaic_0001>

<llo_original>
// kernel: tpu_custom_call.1
$region0: #{tpu_custom_call.1}
  #allocation0 [shape = 'u32[]', space=smem, size = 0x4, offset = 0x4, fixed_abs, tag = 'smem constant byte address 0x4 - core index']
  #allocation1 [shape = 'u32[72,128]{1,0:T(1,128)}', space=vmem, size = 0x9000, scoped, tag = 'internal scratch']
  %s0 = inlined_call_operand.vmem [shape: f32[2,64], index: 0, kind: input, shape index: {}]
  %s1 = inlined_call_operand.vmem [shape: f32[64,32], index: 1, kind: input, shape index: {}]
  %s2 = inlined_call_operand.hbm [shape: f32[2,32], index: 2, kind: output, shape index: {}]
  %s3 = sld [smem:[#allocation0]]
  $region18: #{tpu_custom_call.1} parent=0
    _
  %s5 = ssub.s32 1, %s3
  %s6 = scalar_select 0, %s5, %s3
  $region1: #{tpu_custom_call.1} parent=0
    #allocation2 [shape = 'u8[1024]{0}', space=vmem, size = 0x400, scoped, tag = 'output window, operand 0, single buffered']
    #allocation3 [shape = 's32[1]{0}', space=sflag, size = 0x4, scoped, tag = 'scoped memory for tpu_custom_call.1']
    %7 = vsyncpa [#allocation3], 0
    // Predicated region
    $region2: #{tpu_custom_call.1} parent=1 // pred_check
      _
    $region3: #{tpu_custom_call.1} parent=1 // pred_check_branch
      %9 = sbr.rel (0) target = $region5
    $region4: #{tpu_custom_call.1} parent=1 // pred_region
      _
    $region5: #{tpu_custom_call.1} parent=1 // pred_fallthru
      _
    // Predicated region
    $region6: #{tpu_custom_call.1} parent=1 // pred_check
      _
    $region7: #{tpu_custom_call.1} parent=1 // pred_check_branch
      %11 = sbr.rel (0) target = $region9
    $region8: #{tpu_custom_call.1} parent=1 // pred_region
      _
    $region9: #{tpu_custom_call.1} parent=1 // pred_fallthru
      _
    %v12 = vld [vmem:[%s0] sm:$0x3]
    %v13 = vld [vmem:[%s1] sm:$0xff]
    %v14 = vld [vmem:[%s1 + $0x8] sm:$0xff]
    %v15 = vld [vmem:[%s1 + $0x10] sm:$0xff]
    %v16 = vld [vmem:[%s1 + $0x18] sm:$0xff]
    %v17 = vld [vmem:[%s1 + $0x20] sm:$0xff]
    %v18 = vld [vmem:[%s1 + $0x28] sm:$0xff]
    %v19 = vld [vmem:[%s1 + $0x30] sm:$0xff]
    %v20 = vld [vmem:[%s1 + $0x38] sm:$0xff]
    %vm21 = vcmask 523264
    %v23 = vsel %vm21, %v12, 0
    %25 = vmatpush.msra.mxu0 0.0
    %26 = vmatpush.msra.mxu0 0.0
    %27 = vmatpush.msra.mxu0 0.0
    %28 = vmatpush.msra.mxu0 0.0
    %29 = vmatpush.msra.mxu0 0.0
    %30 = vmatpush.msra.mxu0 0.0
    %31 = vmatpush.msra.mxu0 0.0
    %32 = vmatpush.msra.mxu0 0.0
    %33 = vmatpush.msra.mxu0 %v20
    %34 = vmatpush.msra.mxu0 %v19
    %35 = vmatpush.msra.mxu0 %v18
    %36 = vmatpush.msra.mxu0 %v17
    %37 = vmatpush.msra.mxu0 %v16
    %38 = vmatpush.msra.mxu0 %v15
    %39 = vmatpush.msra.mxu0 %v14
    %40 = vmatpush.msra.mxu0 %v13
    %41 = vmatmul.f32.gmra.mxu0 %v23
    %v42 = vpop.f32.mrf.mxu0
    %v43 = vadd.f32 0.0, %v42
    %44 = vdwg.mxu0
    %vm45 = vcmask 254976
    %46 = vst.msk [vmem:[#allocation2] sm:$0x3] %vm45, %v43
    // Predicated region
    $region10: #{tpu_custom_call.1} parent=1 // pred_check
      _
    $region11: #{tpu_custom_call.1} parent=1 // pred_check_branch
      %48 = sbr.rel (0) target = $region13
    $region12: #{tpu_custom_call.1} parent=1 // pred_region
      %50 = vsyncadd [#allocation3], 0
      %s52 = sshll.u32 [#allocation2], 4
      %s53 = int_to_ptr.vmem [resolvable:$true] %s52
      %s54 = sshll.u32 %s2, 4
      %s55 = int_to_ptr.hbm [resolvable:$true] %s54
      %57 = dma.vmem_to_hbm [thread:$0]  %s53, 32, %s55, [#allocation3]
    $region13: #{tpu_custom_call.1} parent=1 // pred_fallthru
      _
    // Predicated region
    $region14: #{tpu_custom_call.1} parent=1 // pred_check
      _
    $region15: #{tpu_custom_call.1} parent=1 // pred_check_branch
      %59 = sbr.rel (0) target = $region17
    $region16: #{tpu_custom_call.1} parent=1 // pred_region
      %61 = dma.done [#allocation3], 32
    $region17: #{tpu_custom_call.1} parent=1 // pred_fallthru
      _
    %62 = vsyncpa [#allocation3], 1

</llo_original>
